<compile_context>
chip_gen: v5e
topology: v5e:2x2
jax: 0.10.0
libtpu: 0.0.40
codegen_flags: <defaults>
</compile_context>

<pallas_src>
import functools

import jax
import jax.numpy as jnp
from jax.experimental import pallas as pl
from jax.experimental.pallas import tpu as pltpu


def _pixel_shuffle3d_kernel(x_ref, p_ref, o_ref, *, r, X, Y, Z):
    # x_ref: (r*r, X*Y, Z)  -- channels (r2, r3) of this (b, oc, r1) group
    # p_ref: (r, Z, Z*r)    -- p_ref[r3, zi, zo] = 1 iff zo == zi*r + r3 (exact 0/1)
    # o_ref: (X, Y, r*Z*r)  -- o[xi, yi, r2*Z*r + zi*r + r3] = x[r2*r+r3, xi*Y+yi, zi]
    zr = Z * r
    # Hoist the (small) dilation matrices out of the static loops.
    ps = [p_ref[r3] for r3 in range(r)]

    for r2 in range(r):                      # static, tiny loop
        # Z-interleave of the r "r3" channels via exact 0/1 dilation matrices:
        # one (X*Y, Z) x (Z, Z*r) MXU dot per channel, accumulated in f32.
        acc = jnp.dot(x_ref[r2 * r], ps[0], preferred_element_type=jnp.float32)
        for r3 in range(1, r):               # static, tiny loop
            acc = acc + jnp.dot(x_ref[r2 * r + r3], ps[r3],
                                preferred_element_type=jnp.float32)
        # Contiguous lane slice at a static offset; the Y-interleave (r2) is
        # absorbed into the r*Z*r-wide lane dimension of the output block.
        # (X*Y, Z*r) -> (X, Y, Z*r) is a major-dim split (cheap relabel for Y%8==0).
        o_ref[:, :, r2 * zr:(r2 + 1) * zr] = acc.reshape(X, Y, zr).astype(o_ref.dtype)


def pixel_shuffle_3d(x, upscale_factor):
    B, C, X, Y, Z = x.shape
    r = int(upscale_factor)
    if C % (r ** 3) != 0:
        raise ValueError(
            f"Input channels ({C}) must be divisible by upscale_factor^3 ({r})."
        )
    oc = C // r ** 3
    if not jnp.issubdtype(x.dtype, jnp.floating):
        # TODO(synk): integer dtypes would round-trip through the MXU dot; they need a
        # copy-based path.  Float activations only for now.
        raise NotImplementedError("pixel_shuffle_3d kernel supports floating dtypes only")

    zr = Z * r
    rzr = r * zr

    # r tiny 0/1 lane-dilation matrices, built ONCE in the wrapper and kept
    # resident in VMEM via a constant index_map.
    r3i = jax.lax.broadcasted_iota(jnp.int32, (r, Z, zr), 0)
    zii = jax.lax.broadcasted_iota(jnp.int32, (r, Z, zr), 1)
    zoi = jax.lax.broadcasted_iota(jnp.int32, (r, Z, zr), 2)
    p = (zoi == zii * r + r3i).astype(x.dtype)

    # Free adjacent-dim merge so the kernel's dot LHS is already 2-D (X*Y, Z).
    x2 = x.reshape(B, C, X * Y, Z)

    kernel = functools.partial(_pixel_shuffle3d_kernel, r=r, X=X, Y=Y, Z=Z)

    # NOTE: full-spatial blocks; for very large volumes, split X (add a grid axis
    # blocking X*Y) to stay inside the v7x 32 MiB scoped-VMEM budget.
    out6 = pl.pallas_call(
        kernel,
        out_shape=jax.ShapeDtypeStruct((B, oc, X, r, Y, rzr), x.dtype),
        grid=(B, oc, r),
        in_specs=[
            # r*r consecutive channels starting at oc*r**3 + r1*r**2, full volume.
            pl.BlockSpec((None, r * r, X * Y, Z),
                         lambda b, c, r1: (b, c * r + r1, 0, 0)),
            # Dilation matrices: constant block, stays resident across steps.
            pl.BlockSpec((r, Z, zr), lambda b, c, r1: (0, 0, 0)),
        ],
        out_specs=pl.BlockSpec((None, None, X, None, Y, rzr),
                               lambda b, c, r1: (b, c, 0, r1, 0, 0)),
        compiler_params=pltpu.CompilerParams(
            dimension_semantics=("parallel", "parallel", "parallel")),
    )(x2, p)

    # Pure reshape (adjacent-dim merges only): (B, OC, X, r, Y, r*Z*r) -> final NCDHW.
    return out6.reshape(B, oc, X * r, Y * r, Z * r)


def pixel_shuffle_3d_ref(x, r):
    # Pure-JAX reference reproducing the PyTorch view/permute/view semantics.
    B, C, X, Y, Z = x.shape
    oc = C // r ** 3
    mid = x.reshape(B, oc, r, r, r, X, Y, Z)
    mid = jnp.transpose(mid, (0, 1, 5, 2, 6, 3, 7, 4))
    return mid.reshape(B, oc, X * r, Y * r, Z * r)


if __name__ == "__main__":
    # C = OC * r^3 with OC = 2; distinct spatial sizes to exercise indexing.
    B, C, X, Y, Z, r = 2, 16, 4, 8, 16, 2
    key = jax.random.PRNGKey(0)
    x = jax.random.normal(key, (B, C, X, Y, Z), dtype=jnp.float32)

    out = jax.block_until_ready(pixel_shuffle_3d(x, r))
    ref = pixel_shuffle_3d_ref(x, r)

    assert out.shape == (B, C // r ** 3, X * r, Y * r, Z * r), out.shape
    assert out.dtype == x.dtype
    # Default-precision MXU dot may round f32 values at ~bf16 level; tolerance covers it.
    assert jnp.allclose(out, ref, atol=1e-2, rtol=1e-2), float(jnp.max(jnp.abs(out - ref)))

    print("KERNEL_OK")
</pallas_src>

<mosaic_0001>
module attributes {stable_mosaic.version = 11 : i64} {
  func.func @_pixel_shuffle3d_kernel(%arg0: i32, %arg1: i32, %arg2: i32, %arg3: memref<1x4x32x16xf32, #tpu.memory_space<vmem>>, %arg4: memref<2x16x32xf32, #tpu.memory_space<vmem>>, %arg5: memref<1x1x4x1x8x64xf32, #tpu.memory_space<vmem>>) attributes {dimension_semantics = [#tpu.dimension_semantics<parallel>, #tpu.dimension_semantics<parallel>, #tpu.dimension_semantics<parallel>], iteration_bounds = array<i64: 2, 2, 2>, scalar_prefetch = 0 : i64, scratch_operands = 0 : i64, tpu.core_type = #tpu.core_type<tc>, window_params = [{transform_indices = @transform_0, window_bounds = array<i64: 1, 4, 32, 16>}, {pipeline_mode = #tpu.pipeline_mode<synchronous>, transform_indices = @transform_1, window_bounds = array<i64: 2, 16, 32>}, {transform_indices = @transform_2, window_bounds = array<i64: 1, 1, 4, 1, 8, 64>}]} {
    %c0 = arith.constant 0 : index
    %c0_0 = arith.constant 0 : index
    %c0_1 = arith.constant 0 : index
    %0 = vector.load %arg4[%c0, %c0_0, %c0_1] : memref<2x16x32xf32, #tpu.memory_space<vmem>>, vector<1x16x32xf32>
    %1 = vector.shape_cast %0 : vector<1x16x32xf32> to vector<16x32xf32>
    %c1 = arith.constant 1 : index
    %c0_2 = arith.constant 0 : index
    %c0_3 = arith.constant 0 : index
    %2 = vector.load %arg4[%c1, %c0_2, %c0_3] : memref<2x16x32xf32, #tpu.memory_space<vmem>>, vector<1x16x32xf32>
    %3 = vector.shape_cast %2 : vector<1x16x32xf32> to vector<16x32xf32>
    %c0_4 = arith.constant 0 : index
    %c0_5 = arith.constant 0 : index
    %c0_6 = arith.constant 0 : index
    %c0_7 = arith.constant 0 : index
    %4 = vector.load %arg3[%c0_4, %c0_5, %c0_6, %c0_7] : memref<1x4x32x16xf32, #tpu.memory_space<vmem>>, vector<1x1x32x16xf32>
    %5 = vector.shape_cast %4 : vector<1x1x32x16xf32> to vector<32x16xf32>
    %cst = arith.constant dense<0.000000e+00> : vector<32x32xf32>
    %6 = tpu.matmul %5, %1, %cst {dimension_numbers = #tpu.dot_dimension_numbers<[1], [0], [0], [1], [0, 0, 1, 1], [], []>} : vector<32x16xf32>, vector<16x32xf32>, vector<32x32xf32> -> vector<32x32xf32>
    %c0_8 = arith.constant 0 : index
    %c1_9 = arith.constant 1 : index
    %c0_10 = arith.constant 0 : index
    %c0_11 = arith.constant 0 : index
    %7 = vector.load %arg3[%c0_8, %c1_9, %c0_10, %c0_11] : memref<1x4x32x16xf32, #tpu.memory_space<vmem>>, vector<1x1x32x16xf32>
    %8 = vector.shape_cast %7 : vector<1x1x32x16xf32> to vector<32x16xf32>
    %cst_12 = arith.constant dense<0.000000e+00> : vector<32x32xf32>
    %9 = tpu.matmul %8, %3, %cst_12 {dimension_numbers = #tpu.dot_dimension_numbers<[1], [0], [0], [1], [0, 0, 1, 1], [], []>} : vector<32x16xf32>, vector<16x32xf32>, vector<32x32xf32> -> vector<32x32xf32>
    %10 = arith.addf %6, %9 : vector<32x32xf32>
    %11 = vector.shape_cast %10 : vector<32x32xf32> to vector<4x8x32xf32>
    %c0_13 = arith.constant 0 : index
    %c0_14 = arith.constant 0 : index
    %c0_15 = arith.constant 0 : index
    %c0_16 = arith.constant 0 : index
    %c0_17 = arith.constant 0 : index
    %c0_18 = arith.constant 0 : index
    %12 = vector.load %arg5[%c0_13, %c0_14, %c0_15, %c0_16, %c0_17, %c0_18] : memref<1x1x4x1x8x64xf32, #tpu.memory_space<vmem>>, vector<1x1x4x1x8x32xf32>
    %13 = vector.shape_cast %12 : vector<1x1x4x1x8x32xf32> to vector<4x8x32xf32>
    %14 = vector.shape_cast %11 : vector<4x8x32xf32> to vector<1x1x4x1x8x32xf32>
    tpu.vector_store %arg5[%c0_13, %c0_14, %c0_15, %c0_16, %c0_17, %c0_18], %14 {strides = array<i32>} : memref<1x1x4x1x8x64xf32, #tpu.memory_space<vmem>>, vector<1x1x4x1x8x32xf32>,
    %c0_19 = arith.constant 0 : index
    %c2 = arith.constant 2 : index
    %c0_20 = arith.constant 0 : index
    %c0_21 = arith.constant 0 : index
    %15 = vector.load %arg3[%c0_19, %c2, %c0_20, %c0_21] : memref<1x4x32x16xf32, #tpu.memory_space<vmem>>, vector<1x1x32x16xf32>
    %16 = vector.shape_cast %15 : vector<1x1x32x16xf32> to vector<32x16xf32>
    %cst_22 = arith.constant dense<0.000000e+00> : vector<32x32xf32>
    %17 = tpu.matmul %16, %1, %cst_22 {dimension_numbers = #tpu.dot_dimension_numbers<[1], [0], [0], [1], [0, 0, 1, 1], [], []>} : vector<32x16xf32>, vector<16x32xf32>, vector<32x32xf32> -> vector<32x32xf32>
    %c0_23 = arith.constant 0 : index
    %c3 = arith.constant 3 : index
    %c0_24 = arith.constant 0 : index
    %c0_25 = arith.constant 0 : index
    %18 = vector.load %arg3[%c0_23, %c3, %c0_24, %c0_25] : memref<1x4x32x16xf32, #tpu.memory_space<vmem>>, vector<1x1x32x16xf32>
    %19 = vector.shape_cast %18 : vector<1x1x32x16xf32> to vector<32x16xf32>
    %cst_26 = arith.constant dense<0.000000e+00> : vector<32x32xf32>
    %20 = tpu.matmul %19, %3, %cst_26 {dimension_numbers = #tpu.dot_dimension_numbers<[1], [0], [0], [1], [0, 0, 1, 1], [], []>} : vector<32x16xf32>, vector<16x32xf32>, vector<32x32xf32> -> vector<32x32xf32>
    %21 = arith.addf %17, %20 : vector<32x32xf32>
    %22 = vector.shape_cast %21 : vector<32x32xf32> to vector<4x8x32xf32>
    %c0_27 = arith.constant 0 : index
    %c0_28 = arith.constant 0 : index
    %c0_29 = arith.constant 0 : index
    %c0_30 = arith.constant 0 : index
    %c0_31 = arith.constant 0 : index
    %c32 = arith.constant 32 : index
    %23 = vector.load %arg5[%c0_27, %c0_28, %c0_29, %c0_30, %c0_31, %c32] : memref<1x1x4x1x8x64xf32, #tpu.memory_space<vmem>>, vector<1x1x4x1x8x32xf32>
    %24 = vector.shape_cast %23 : vector<1x1x4x1x8x32xf32> to vector<4x8x32xf32>
    %25 = vector.shape_cast %22 : vector<4x8x32xf32> to vector<1x1x4x1x8x32xf32>
    tpu.vector_store %arg5[%c0_27, %c0_28, %c0_29, %c0_30, %c0_31, %c32], %25 {strides = array<i32>} : memref<1x1x4x1x8x64xf32, #tpu.memory_space<vmem>>, vector<1x1x4x1x8x32xf32>,
    return
  }
  func.func @transform_0(%arg0: i32, %arg1: i32, %arg2: i32) -> (i32, i32, i32, i32) {
    %c2_i32 = arith.constant 2 : i32
    %0 = arith.muli %arg1, %c2_i32 : i32
    %1 = arith.addi %0, %arg2 : i32
    %c0_i32 = arith.constant 0 : i32
    %c0_i32_0 = arith.constant 0 : i32
    %c0_i32_1 = arith.constant 0 : i32
    return %arg0, %1, %c0_i32, %c0_i32_0 : i32, i32, i32, i32
  }
  func.func @transform_1(%arg0: i32, %arg1: i32, %arg2: i32) -> (i32, i32, i32) {
    %c0_i32 = arith.constant 0 : i32
    %c0_i32_0 = arith.constant 0 : i32
    %c0_i32_1 = arith.constant 0 : i32
    %c0_i32_2 = arith.constant 0 : i32
    return %c0_i32, %c0_i32_0, %c0_i32_1 : i32, i32, i32
  }
  func.func @transform_2(%arg0: i32, %arg1: i32, %arg2: i32) -> (i32, i32, i32, i32, i32, i32) {
    %c0_i32 = arith.constant 0 : i32
    %c0_i32_0 = arith.constant 0 : i32
    %c0_i32_1 = arith.constant 0 : i32
    %c0_i32_2 = arith.constant 0 : i32
    return %arg0, %arg1, %c0_i32, %arg2, %c0_i32_0, %c0_i32_1 : i32, i32, i32, i32, i32, i32
  }
}

</mosaic_0001>

<llo_original>
// kernel: tpu_custom_call.1
$region0: #{tpu_custom_call.1}
  #allocation0 [shape = 'u32[]', space=smem, size = 0x4, offset = 0x4, fixed_abs, tag = 'smem constant byte address 0x4 - core index']
  #allocation1 [shape = 'u32[72,128]{1,0:T(1,128)}', space=vmem, size = 0x9000, scoped, tag = 'internal scratch']
  %s0 = inlined_call_operand.vmem [shape: f32[2,16,32,16], index: 0, kind: input, shape index: {}]
  %s1 = inlined_call_operand.vmem [shape: f32[2,16,32], index: 1, kind: input, shape index: {}]
  %s2 = inlined_call_operand.hbm [shape: f32[2,2,4,2,8,64], index: 2, kind: output, shape index: {}]
  %s3 = sld [smem:[#allocation0]]
  $region41: #{tpu_custom_call.1} parent=0
    _
  %s5 = ssub.s32 1, %s3
  %s6 = scalar_select 0, %s5, %s3
  $region1: #{tpu_custom_call.1} parent=0
    #allocation2 [shape = 'u8[32768]{0}', space=vmem, size = 0x8000, scoped, tag = 'output window, operand 0']
    #allocation3 [shape = 's32[2]{0}', space=sflag, size = 0x8, scoped, tag = 'scoped memory for tpu_custom_call.1']
    %7 = vsyncpa [#allocation3], 0
    %s8 = scalar_lea.sflag [#allocation3], 1
    %9 = vsyncpa %s8, 0
    loop: start=0, step=1, limit=10
    $region2: #{tpu_custom_call.1} parent=1 // loop_pre_header
      _
    $region3: #{tpu_custom_call.1} parent=1 // loop_header
      %s11 = sphi 0, %s15
      %p12 = scmp.ge.s32.totalorder %s11, 10
      %s18 = sphi 0, %s37
      %s19 = sphi 0, %s33
      %s20 = sphi 0, %s29
      %s21 = sphi 0, %s18
      %s22 = sphi 0, %s19
      %s23 = sphi 0, %s20
      %s24 = sphi 0, %s21
      %s25 = sphi 0, %s22
      %s26 = sphi 0, %s23
      %s46 = sphi 0, %s48
      %s49 = sphi 0, %s46
      %s50 = sphi 0, %s49
      %s66 = sphi 0, %s50
      %s70 = sphi 0, %s70
      %s72 = sphi 0, %s70
      %s73 = sphi 0, %s72
      %s87 = sphi 0, %s73
      %s97 = sphi 0, %s99
      %s100 = sphi 0, %s97
      %s101 = sphi 0, %s100
      %s117 = sphi 0, %s101
    $region4: #{tpu_custom_call.1} parent=1 // loop_header_branch
      %14 = sbr.rel (%p12) target = $region8
    $region5: #{tpu_custom_call.1} parent=1 // loop_body
      %s16 = ssub.s32 %s11, 1
      %s17 = ssub.s32 %s11, 2
      %s27 = sadd.s32 1, %s20
      %p28 = scmp.ge.s32.totalorder %s27, 2
      %s29 = scalar_select %p28, 0, %s27
      %s30 = sadd.s32 1, %s19
      %s31 = scalar_select %p28, %s30, %s19
      %p32 = scmp.ge.s32.totalorder %s31, 2
      %s33 = scalar_select %p32, 0, %s31
      %s34 = sadd.s32 1, %s18
      %s35 = scalar_select %p32, %s34, %s18
      %p36 = scmp.ge.s32.totalorder %s35, 2
      %s37 = scalar_select %p36, 0, %s35
      %s38 = smul.u32 %s19, 2
      %s39 = sadd.s32 %s38, %s20
      %s40 = smul.u32 %s33, 2
      %s41 = sadd.s32 %s40, %s29
      %s42 = ssub.s32 %s18, %s37
      %s43 = ssub.s32 %s39, %s41
      %s44 = sor.u32 %s42, %s43
      %p45 = scmp.eq.s32.totalorder %s44, 0
      %s47 = sadd.s32 %s46, 1
      %s48 = scalar_select %p45, %s46, %s47
      %p51 = pneg %p45
      %p52 = scmp.eq.s32.totalorder %s11, 7
      %p53 = por %p51, %p52
      %p54 = scmp.ne.s32.totalorder %s46, %s49
      %p55 = scmp.eq.s32.totalorder %s11, 0
      %p56 = por %p54, %p55
      %p57 = scmp.ne.s32.totalorder %s46, %s49
      %p58 = scmp.eq.s32.totalorder %s16, 7
      %p59 = por %p57, %p58
      %p60 = scmp.ne.s32.totalorder %s49, %s50
      %p61 = scmp.eq.s32.totalorder %s16, 0
      %p62 = por %p60, %p61
      %p63 = scmp.ne.s32.totalorder %s49, %s50
      %p64 = scmp.eq.s32.totalorder %s17, 7
      %p65 = por %p63, %p64
      %p67 = scmp.ne.s32.totalorder %s50, %s66
      %p68 = scmp.eq.s32.totalorder %s17, 0
      %p69 = por %p67, %p68
      %s71 = sadd.s32 %s70, 1
      %p74 = scmp.eq.s32.totalorder %s11, 7
      %p75 = scmp.ne.s32.totalorder %s70, %s72
      %p76 = scmp.eq.s32.totalorder %s11, 0
      %p77 = por %p75, %p76
      %p78 = scmp.ne.s32.totalorder %s70, %s72
      %p79 = scmp.eq.s32.totalorder %s16, 7
      %p80 = por %p78, %p79
      %p81 = scmp.ne.s32.totalorder %s72, %s73
      %p82 = scmp.eq.s32.totalorder %s16, 0
      %p83 = por %p81, %p82
      %p84 = scmp.ne.s32.totalorder %s72, %s73
      %p85 = scmp.eq.s32.totalorder %s17, 7
      %p86 = por %p84, %p85
      %p88 = scmp.ne.s32.totalorder %s73, %s87
      %p89 = scmp.eq.s32.totalorder %s17, 0
      %p90 = por %p88, %p89
      %s91 = ssub.s32 %s18, %s37
      %s92 = ssub.s32 %s19, %s33
      %s93 = sor.u32 %s91, %s92
      %s94 = ssub.s32 %s20, %s29
      %s95 = sor.u32 %s93, %s94
      %p96 = scmp.eq.s32.totalorder %s95, 0
      %s98 = sadd.s32 %s97, 1
      %s99 = scalar_select %p96, %s97, %s98
      %p102 = pneg %p96
      %p103 = scmp.eq.s32.totalorder %s11, 7
      %p104 = por %p102, %p103
      %p105 = scmp.ne.s32.totalorder %s97, %s100
      %p106 = scmp.eq.s32.totalorder %s11, 0
      %p107 = por %p105, %p106
      %p108 = scmp.ne.s32.totalorder %s97, %s100
      %p109 = scmp.eq.s32.totalorder %s16, 7
      %p110 = por %p108, %p109
      %p111 = scmp.ne.s32.totalorder %s100, %s101
      %p112 = scmp.eq.s32.totalorder %s16, 0
      %p113 = por %p111, %p112
      %p114 = scmp.ne.s32.totalorder %s100, %s101
      %p115 = scmp.eq.s32.totalorder %s17, 7
      %p116 = por %p114, %p115
      %p118 = scmp.ne.s32.totalorder %s101, %s117
      %p119 = scmp.eq.s32.totalorder %s17, 0
      %p120 = por %p118, %p119
      %p121 = scmp.le.s32.totalorder 1, %s11
      %p122 = scmp.lt.s32.totalorder %s11, 9
      %p123 = pnand %p121, %p122
      %p124 = pneg %p123
      // Predicated region
      $region9: #{tpu_custom_call.1} parent=5 // pred_check
        _
      $region10: #{tpu_custom_call.1} parent=5 // pred_check_branch
        %126 = sbr.rel (%p123) target = $region12
      $region11: #{tpu_custom_call.1} parent=5 // pred_region
        %s127 = ssub.s32 %s11, 1
        // Predicated region
        $region13: #{tpu_custom_call.1} parent=11 // pred_check
          %p128 = pneg %p83
        $region14: #{tpu_custom_call.1} parent=11 // pred_check_branch
          %130 = sbr.rel (%p128) target = $region16
        $region15: #{tpu_custom_call.1} parent=11 // pred_region
          _
        $region16: #{tpu_custom_call.1} parent=11 // pred_fallthru
          _
      $region12: #{tpu_custom_call.1} parent=5 // pred_fallthru
        _
      %p131 = scmp.lt.s32.totalorder %s11, 8
      // Predicated region
      $region17: #{tpu_custom_call.1} parent=5 // pred_check
        %p132 = pneg %p131
      $region18: #{tpu_custom_call.1} parent=5 // pred_check_branch
        %134 = sbr.rel (%p132) target = $region20
      $region19: #{tpu_custom_call.1} parent=5 // pred_region
        // Predicated region
        $region21: #{tpu_custom_call.1} parent=19 // pred_check
          %p135 = pneg %p56
        $region22: #{tpu_custom_call.1} parent=19 // pred_check_branch
          %137 = sbr.rel (%p135) target = $region24
        $region23: #{tpu_custom_call.1} parent=19 // pred_region
          %s138 = smul.u32 %s19, 2
          %s139 = sadd.s32 %s138, %s20
          %s140 = smul.u32 4, %s139
          %p141 = scmp.lt.s32.totalorder %s18, 1
          %s142 = scalar_select %p141, %s18, 1
          %p143 = scmp.lt.s32.totalorder %s140, 15
          %s144 = scalar_select %p143, %s140, 15
          %s145 = smul.addr %s144, 4
          %s146 = smul.addr %s142, 64
          %s147 = sadd.s32 %s145, %s146
          %s148 = smul.addr %s147, 8
          %s149 = scalar_lea.vmem %s0, %s148
          %s150 = smul.u32 %s19, 2
          %s151 = sadd.s32 %s150, %s20
          %s152 = smul.u32 4, %s151
        $region24: #{tpu_custom_call.1} parent=19 // pred_fallthru
          _
      $region20: #{tpu_custom_call.1} parent=5 // pred_fallthru
        _
      %p153 = scmp.le.s32.totalorder 1, %s11
      %p154 = scmp.lt.s32.totalorder %s11, 9
      %p155 = pnand %p153, %p154
      %p156 = pneg %p155
      // Predicated region
      $region25: #{tpu_custom_call.1} parent=5 // pred_check
        _
      $region26: #{tpu_custom_call.1} parent=5 // pred_check_branch
        %158 = sbr.rel (%p155) target = $region28
      $region27: #{tpu_custom_call.1} parent=5 // pred_region
        %s159 = ssub.s32 %s11, 1
        %s160 = smul.u32 %s22, 2
        %s161 = sadd.s32 %s160, %s23
        %s162 = smul.u32 4, %s161
        %p163 = scmp.lt.s32.totalorder %s21, 1
        %s164 = scalar_select %p163, %s21, 1
        %p165 = scmp.lt.s32.totalorder %s162, 15
        %s166 = scalar_select %p165, %s162, 15
        %s167 = smul.addr %s166, 4
        %s168 = smul.addr %s164, 64
        %s169 = sadd.s32 %s167, %s168
        %s170 = smul.addr %s169, 8
        %s171 = scalar_lea.vmem %s0, %s170
        %p172 = pneg %p62
        %p173 = pneg %p59
        %p174 = pneg %p83
        %p175 = pneg %p80
        %p176 = pneg %p113
        %p177 = pneg %p110
        %s178 = sand.u32 %s100, 1
        %s179 = scalar_lea.sflag [#allocation3], %s178
        %s180 = sand.u32 %s100, 1
        %s181 = smul.addr %s180, 32
        %s182 = scalar_lea.vmem [#allocation2], %s181
        %s183 = smul.u32 %s22, 2
        %s184 = sadd.s32 %s183, %s23
        %s185 = smul.u32 4, %s184
        %p186 = scmp.lt.s32.totalorder %s21, 1
        %s187 = scalar_select %p186, %s21, 1
        %p188 = scmp.lt.s32.totalorder %s185, 15
        %s189 = scalar_select %p188, %s185, 15
        %s190 = smul.addr %s189, 4
        %s191 = smul.addr %s187, 64
        %s192 = sadd.s32 %s190, %s191
        %s193 = smul.addr %s192, 8
        %s194 = scalar_lea.vmem %s0, %s193
        %s195 = smul.u32 %s22, 2
        %s196 = sadd.s32 %s195, %s23
        %s197 = smul.u32 4, %s196
        %v198 = vld [vmem:[%s1] sm:$0xff]
        %v199 = vld [vmem:[%s1 + $0x8] sm:$0xff]
        %s200 = scalar_lea.vmem %s1, 16
        %v201 = vld [vmem:[%s200] sm:$0xff]
        %v202 = vld [vmem:[%s200 + $0x8] sm:$0xff]
        %v203 = vld [vmem:[%s194] sm:$0xff]
        %v204 = vld [vmem:[%s194 + $0x8] sm:$0xff]
        %v205 = vld [vmem:[%s194 + $0x10] sm:$0xff]
        %v206 = vld [vmem:[%s194 + $0x18] sm:$0xff]
        %s207 = scalar_lea.vmem %s194, 32
        %v208 = vld [vmem:[%s207] sm:$0xff]
        %v209 = vld [vmem:[%s207 + $0x8] sm:$0xff]
        %v210 = vld [vmem:[%s207 + $0x10] sm:$0xff]
        %v211 = vld [vmem:[%s207 + $0x18] sm:$0xff]
        %vm212 = vcmask 130048
        %v214 = vsel %vm212, %v208, 0
        %v217 = vsel %vm212, %v209, 0
        %v220 = vsel %vm212, %v210, 0
        %v223 = vsel %vm212, %v211, 0
        %225 = vmatpush.msra.mxu0 0.0
        %226 = vmatpush.msra.mxu0 0.0
        %227 = vmatpush.msra.mxu0 0.0
        %228 = vmatpush.msra.mxu0 0.0
        %229 = vmatpush.msra.mxu0 0.0
        %230 = vmatpush.msra.mxu0 0.0
        %231 = vmatpush.msra.mxu0 0.0
        %232 = vmatpush.msra.mxu0 0.0
        %233 = vmatpush.msra.mxu0 0.0
        %234 = vmatpush.msra.mxu0 0.0
        %235 = vmatpush.msra.mxu0 0.0
        %236 = vmatpush.msra.mxu0 0.0
        %237 = vmatpush.msra.mxu0 0.0
        %238 = vmatpush.msra.mxu0 0.0
        %239 = vmatpush.msra.mxu0 %v202
        %240 = vmatpush.msra.mxu0 %v201
        %241 = vmatmul.f32.gmra.mxu0 %v214
        %v242 = vpop.f32.mrf.mxu0
        %v243 = vadd.f32 0.0, %v242
        %244 = vmatmul.f32.gmra.mxu0 %v217
        %v245 = vpop.f32.mrf.mxu0
        %v246 = vadd.f32 0.0, %v245
        %247 = vmatmul.f32.gmra.mxu0 %v220
        %v248 = vpop.f32.mrf.mxu0
        %v249 = vadd.f32 0.0, %v248
        %250 = vmatmul.f32.gmra.mxu0 %v223
        %v251 = vpop.f32.mrf.mxu0
        %v252 = vadd.f32 0.0, %v251
        %253 = vdwg.mxu0
        %v255 = vsel %vm212, %v203, 0
        %v258 = vsel %vm212, %v204, 0
        %v261 = vsel %vm212, %v205, 0
        %v264 = vsel %vm212, %v206, 0
        %266 = vmatpush.msra.mxu0 0.0
        %267 = vmatpush.msra.mxu0 0.0
        %268 = vmatpush.msra.mxu0 0.0
        %269 = vmatpush.msra.mxu0 0.0
        %270 = vmatpush.msra.mxu0 0.0
        %271 = vmatpush.msra.mxu0 0.0
        %272 = vmatpush.msra.mxu0 0.0
        %273 = vmatpush.msra.mxu0 0.0
        %274 = vmatpush.msra.mxu0 0.0
        %275 = vmatpush.msra.mxu0 0.0
        %276 = vmatpush.msra.mxu0 0.0
        %277 = vmatpush.msra.mxu0 0.0
        %278 = vmatpush.msra.mxu0 0.0
        %279 = vmatpush.msra.mxu0 0.0
        %280 = vmatpush.msra.mxu0 %v199
        %281 = vmatpush.msra.mxu0 %v198
        %282 = vmatmul.f32.gmra.mxu0 %v255
        %v283 = vpop.f32.mrf.mxu0
        %v284 = vadd.f32 %v243, %v283
        %285 = vmatmul.f32.gmra.mxu0 %v258
        %v286 = vpop.f32.mrf.mxu0
        %v287 = vadd.f32 %v246, %v286
        %288 = vmatmul.f32.gmra.mxu0 %v261
        %v289 = vpop.f32.mrf.mxu0
        %v290 = vadd.f32 %v249, %v289
        %291 = vmatmul.f32.gmra.mxu0 %v264
        %v292 = vpop.f32.mrf.mxu0
        %v293 = vadd.f32 %v252, %v292
        %294 = vdwg.mxu0
        %vm295 = vcmask 261120
        %296 = vst.msk [vmem:[%s182] sm:$0xff] %vm295, %v284
        %297 = vst.msk [vmem:[%s182 + $0x8] sm:$0xff] %vm295, %v287
        %298 = vst.msk [vmem:[%s182 + $0x10] sm:$0xff] %vm295, %v290
        %299 = vst.msk [vmem:[%s182 + $0x18] sm:$0xff] %vm295, %v293
        %s300 = scalar_lea.vmem %s194, 64
        %v301 = vld [vmem:[%s300] sm:$0xff]
        %v302 = vld [vmem:[%s300 + $0x8] sm:$0xff]
        %v303 = vld [vmem:[%s300 + $0x10] sm:$0xff]
        %v304 = vld [vmem:[%s300 + $0x18] sm:$0xff]
        %s305 = scalar_lea.vmem %s194, 96
        %v306 = vld [vmem:[%s305] sm:$0xff]
        %v307 = vld [vmem:[%s305 + $0x8] sm:$0xff]
        %v308 = vld [vmem:[%s305 + $0x10] sm:$0xff]
        %v309 = vld [vmem:[%s305 + $0x18] sm:$0xff]
        %v311 = vsel %vm212, %v306, 0
        %v314 = vsel %vm212, %v307, 0
        %v317 = vsel %vm212, %v308, 0
        %v320 = vsel %vm212, %v309, 0
        %322 = vmatpush.msra.mxu0 0.0
        %323 = vmatpush.msra.mxu0 0.0
        %324 = vmatpush.msra.mxu0 0.0
        %325 = vmatpush.msra.mxu0 0.0
        %326 = vmatpush.msra.mxu0 0.0
        %327 = vmatpush.msra.mxu0 0.0
        %328 = vmatpush.msra.mxu0 0.0
        %329 = vmatpush.msra.mxu0 0.0
        %330 = vmatpush.msra.mxu0 0.0
        %331 = vmatpush.msra.mxu0 0.0
        %332 = vmatpush.msra.mxu0 0.0
        %333 = vmatpush.msra.mxu0 0.0
        %334 = vmatpush.msra.mxu0 0.0
        %335 = vmatpush.msra.mxu0 0.0
        %336 = vmatpush.msra.mxu0 %v202
        %337 = vmatpush.msra.mxu0 %v201
        %338 = vmatmul.f32.gmra.mxu0 %v311
        %v339 = vpop.f32.mrf.mxu0
        %v340 = vadd.f32 0.0, %v339
        %341 = vmatmul.f32.gmra.mxu0 %v314
        %v342 = vpop.f32.mrf.mxu0
        %v343 = vadd.f32 0.0, %v342
        %344 = vmatmul.f32.gmra.mxu0 %v317
        %v345 = vpop.f32.mrf.mxu0
        %v346 = vadd.f32 0.0, %v345
        %347 = vmatmul.f32.gmra.mxu0 %v320
        %v348 = vpop.f32.mrf.mxu0
        %v349 = vadd.f32 0.0, %v348
        %350 = vdwg.mxu0
        %v352 = vsel %vm212, %v301, 0
        %v355 = vsel %vm212, %v302, 0
        %v358 = vsel %vm212, %v303, 0
        %v361 = vsel %vm212, %v304, 0
        %363 = vmatpush.msra.mxu0 0.0
        %364 = vmatpush.msra.mxu0 0.0
        %365 = vmatpush.msra.mxu0 0.0
        %366 = vmatpush.msra.mxu0 0.0
        %367 = vmatpush.msra.mxu0 0.0
        %368 = vmatpush.msra.mxu0 0.0
        %369 = vmatpush.msra.mxu0 0.0
        %370 = vmatpush.msra.mxu0 0.0
        %371 = vmatpush.msra.mxu0 0.0
        %372 = vmatpush.msra.mxu0 0.0
        %373 = vmatpush.msra.mxu0 0.0
        %374 = vmatpush.msra.mxu0 0.0
        %375 = vmatpush.msra.mxu0 0.0
        %376 = vmatpush.msra.mxu0 0.0
        %377 = vmatpush.msra.mxu0 %v199
        %378 = vmatpush.msra.mxu0 %v198
        %379 = vmatmul.f32.gmra.mxu0 %v352
        %v380 = vpop.f32.mrf.mxu0
        %v381 = vadd.f32 %v340, %v380
        %382 = vmatmul.f32.gmra.mxu0 %v355
        %v383 = vpop.f32.mrf.mxu0
        %v384 = vadd.f32 %v343, %v383
        %385 = vmatmul.f32.gmra.mxu0 %v358
        %v386 = vpop.f32.mrf.mxu0
        %v387 = vadd.f32 %v346, %v386
        %388 = vmatmul.f32.gmra.mxu0 %v361
        %v389 = vpop.f32.mrf.mxu0
        %v390 = vadd.f32 %v349, %v389
        %391 = vdwg.mxu0
        %396 = vrot.lane.b32.xlu0 %v381, 32
        %v397 = vpop.permute.xlu0 %396
        %398 = vrot.lane.b32.xlu0 %v384, 32
        %v399 = vpop.permute.xlu0 %398
        %400 = vrot.lane.b32.xlu0 %v387, 32
        %v401 = vpop.permute.xlu0 %400
        %402 = vrot.lane.b32.xlu0 %v390, 32
        %v403 = vpop.permute.xlu0 %402
        %vm408 = vcmask 523520
        %409 = vst.msk [vmem:[%s182] sm:$0xff] %vm408, %v397
        %410 = vst.msk [vmem:[%s182 + $0x8] sm:$0xff] %vm408, %v399
        %411 = vst.msk [vmem:[%s182 + $0x10] sm:$0xff] %vm408, %v401
        %412 = vst.msk [vmem:[%s182 + $0x18] sm:$0xff] %vm408, %v403
        %s413 = sand.u32 %s100, 1
        %s414 = scalar_lea.sflag [#allocation3], %s413
        %s415 = sand.u32 %s100, 1
        %s416 = smul.addr %s415, 32
        %s417 = scalar_lea.vmem [#allocation2], %s416
        // Predicated region
        $region29: #{tpu_custom_call.1} parent=27 // pred_check
          %p418 = pneg %p110
        $region30: #{tpu_custom_call.1} parent=27 // pred_check_branch
          %420 = sbr.rel (%p418) target = $region32
        $region31: #{tpu_custom_call.1} parent=27 // pred_region
          %422 = vsyncadd %s414, 0
          %s423 = smul.addr %s22, 8
          %s424 = sadd.s32 %s23, %s423
          %s425 = smul.addr %s21, 16
          %s426 = sadd.s32 %s424, %s425
          %s427 = smul.addr %s426, 8
          %s428 = scalar_lea.hbm %s2, %s427
          %s429 = sshll.u32 %s417, 4
          %s430 = int_to_ptr.vmem [resolvable:$true] %s429
          %s431 = sshll.u32 %s428, 4
          %s432 = int_to_ptr.hbm [resolvable:$true] %s431
          %437 = dma.vmem_to_hbm [thread:$0]  %s430, 512, %s432, %s414, 128, 256, 8
        $region32: #{tpu_custom_call.1} parent=27 // pred_fallthru
          _
      $region28: #{tpu_custom_call.1} parent=5 // pred_fallthru
        _
      %p438 = scmp.le.s32.totalorder 2, %s11
      // Predicated region
      $region33: #{tpu_custom_call.1} parent=5 // pred_check
        %p439 = pneg %p438
      $region34: #{tpu_custom_call.1} parent=5 // pred_check_branch
        %441 = sbr.rel (%p439) target = $region36
      $region35: #{tpu_custom_call.1} parent=5 // pred_region
        %s442 = ssub.s32 %s11, 2
        // Predicated region
        $region37: #{tpu_custom_call.1} parent=35 // pred_check
          %p443 = pneg %p116
        $region38: #{tpu_custom_call.1} parent=35 // pred_check_branch
          %445 = sbr.rel (%p443) target = $region40
        $region39: #{tpu_custom_call.1} parent=35 // pred_region
          %s446 = sand.u32 %s101, 1
          %s447 = scalar_lea.sflag [#allocation3], %s446
          %s448 = sand.u32 %s101, 1
          %s449 = smul.addr %s448, 32
          %s450 = scalar_lea.vmem [#allocation2], %s449
          %452 = dma.done %s447, 512
        $region40: #{tpu_custom_call.1} parent=35 // pred_fallthru
          _
      $region36: #{tpu_custom_call.1} parent=5 // pred_fallthru
        _
    $region6: #{tpu_custom_call.1} parent=1 // loop_footer
      %s15 = sadd.s32 1, %s11
    $region7: #{tpu_custom_call.1} parent=1 // loop_footer_branch
      %10 = sbr.rel target = $region3
    $region8: #{tpu_custom_call.1} parent=1 // loop_exit
      _
    %453 = vsyncpa [#allocation3], 1
    %s454 = scalar_lea.sflag [#allocation3], 1
    %455 = vsyncpa %s454, 1

</llo_original>
